<compile_context>
chip_gen: v7x
topology: tpu7x:2x2x1
jax: 0.10.0
libtpu: 0.0.40
codegen_flags: <defaults>
</compile_context>

<pallas_src>
import math

import jax
import jax.numpy as jnp
import numpy as np
from jax.experimental import pallas as pl
from jax.experimental.pallas import tpu as pltpu

# ---------------- config (small synthetic shapes) ----------------
B, C, H, W = 2, 4, 16, 16
HW = H * W
HIDDEN = 32
TIMESTEPS = 1000  # module default
INV_N = 1.0 / float(B * C * HW)


# ---------------- schedule (glue, matches cosine_beta_schedule) ---------------
def cosine_beta_schedule(timesteps, s=0.008):
    steps = timesteps + 1
    x = jnp.linspace(0.0, float(steps), steps, dtype=jnp.float32)
    alphas_cumprod = jnp.cos((x / steps + s) / (1 + s) * jnp.pi * 0.5) ** 2
    alphas_cumprod = alphas_cumprod / alphas_cumprod[0]
    betas = 1.0 - alphas_cumprod[1:] / alphas_cumprod[:-1]
    return jnp.clip(betas, 0.0, 0.999)


def make_schedule(timesteps):
    betas = cosine_beta_schedule(timesteps)
    alphas = 1.0 - betas
    alphas_cumprod = jnp.cumprod(alphas, axis=0)
    return jnp.sqrt(alphas_cumprod), jnp.sqrt(1.0 - alphas_cumprod)


# ---------------- Pallas kernel (single invocation, whole problem) -------------
# Inputs (all resident, one shot, 5 VMEM DMAs total):
#   x, noise : (B*C, HW)  = (8, 256)   batch folded into sublanes
#   scal     : (B*C, 3)   col0 = sqrt_ac[t_b], col1 = sqrt_omac[t_b], col2 = b2
#   p1       : (B*HIDDEN, C*B + 1) = (64, 9)
#                 [:, 0:8]  = blockdiag(w1^T, w1^T)
#                 [:, 8:9]  = stacked (temb[t_b] + b1) column
#   w2bd     : (B*C, B*HIDDEN) = (8, 64) = blockdiag(w2^T, w2^T)
# Output:
#   loss     : (1,) SMEM scalar (MSE)
def diffuser_loss_kernel(x_ref, n_ref, scal_ref, p1_ref, w2bd_ref, loss_ref):
    x = x_ref[...]                      # (8, 256)
    noise = n_ref[...]                  # (8, 256)
    scal = scal_ref[...]                # (8, 3)
    a = scal[:, 0:1]                    # (8, 1) sqrt_alphas_cumprod[t]
    s = scal[:, 1:2]                    # (8, 1) sqrt_one_minus_alphas_cumprod[t]
    b2 = scal[:, 2:3]                   # (8, 1) output bias (per channel, per batch)
    p1 = p1_ref[...]                    # (64, 9)
    w1bd = p1[:, 0:8]                   # (64, 8) block-diag first-layer weights
    tb = p1[:, 8:9]                     # (64, 1) temb + b1 column
    w2bd = w2bd_ref[...]                # (8, 64) block-diag second-layer weights

    # q(x_t | x_0): add_noise on the stacked slab
    noised = a * x + s * noise                                          # (8, 256)

    # denoise_fn: fused block-diagonal pointwise MLP + time embedding
    h = jnp.dot(w1bd, noised, preferred_element_type=jnp.float32)       # (64, 256)
    h = jnp.maximum(h + tb, 0.0)
    recon = jnp.dot(w2bd, h, preferred_element_type=jnp.float32) + b2   # (8, 256)

    # single full reduction + constant multiply
    diff = x - recon
    loss_ref[0] = jnp.sum(diff * diff) * jnp.float32(INV_N)


def cold_gaussian_diffuser_loss(x_nchw, noise_nchw, t,
                                sqrt_ac, sqrt_omac,
                                w1, b1, w2, b2, temb_table):
    # glue: NCHW -> (B*C, HW) is a free reshape (B and C are adjacent leading dims)
    x = x_nchw.reshape(B * C, HW)
    noise = noise_nchw.reshape(B * C, HW)

    # per-row (batch x channel) schedule scalars + output bias, packed in one slab
    a = jnp.repeat(sqrt_ac[t].astype(jnp.float32), C).reshape(B * C, 1)       # (8,1)
    s = jnp.repeat(sqrt_omac[t].astype(jnp.float32), C).reshape(B * C, 1)     # (8,1)
    b2_col = jnp.tile(b2.reshape(C).astype(jnp.float32), B).reshape(B * C, 1) # (8,1)
    scal = jnp.concatenate([a, s, b2_col], axis=1)                            # (8,3)

    # block-diagonal fused weights (tiny constants, built once in the wrapper)
    w1t = jnp.transpose(w1).astype(jnp.float32)                 # (HIDDEN, C)
    w2t = jnp.transpose(w2).astype(jnp.float32)                 # (C, HIDDEN)
    eye_b = jnp.eye(B, dtype=jnp.float32)
    w1bd = jnp.kron(eye_b, w1t)                                 # (B*HIDDEN, B*C) = (64, 8)
    w2bd = jnp.kron(eye_b, w2t)                                 # (B*C, B*HIDDEN) = (8, 64)

    # fold b1 into the per-batch time embedding, stack into one column
    temb_b1 = (temb_table[t].astype(jnp.float32)
               + b1.reshape(1, HIDDEN).astype(jnp.float32)).reshape(B * HIDDEN, 1)  # (64,1)
    p1 = jnp.concatenate([w1bd, temb_b1], axis=1)               # (64, 9)

    out = pl.pallas_call(
        diffuser_loss_kernel,
        out_shape=jax.ShapeDtypeStruct((1,), jnp.float32),
        in_specs=[
            pl.BlockSpec(memory_space=pltpu.MemorySpace.VMEM),   # x     (8, 256)
            pl.BlockSpec(memory_space=pltpu.MemorySpace.VMEM),   # noise (8, 256)
            pl.BlockSpec(memory_space=pltpu.MemorySpace.VMEM),   # scal  (8, 3)
            pl.BlockSpec(memory_space=pltpu.MemorySpace.VMEM),   # p1    (64, 9)
            pl.BlockSpec(memory_space=pltpu.MemorySpace.VMEM),   # w2bd  (8, 64)
        ],
        out_specs=pl.BlockSpec(memory_space=pltpu.MemorySpace.SMEM),
    )(x, noise, scal, p1, w2bd)
    return out[0]


# ---------------- pure-JAX reference for verification ----------------
def reference_loss(x_nchw, noise_nchw, t, sqrt_ac, sqrt_omac,
                   w1, b1, w2, b2, temb_table):
    a = sqrt_ac[t].reshape(B, 1, 1, 1)
    s = sqrt_omac[t].reshape(B, 1, 1, 1)
    noised = a * x_nchw + s * noise_nchw                        # NCHW
    z = jnp.transpose(noised, (0, 2, 3, 1)).reshape(B, HW, C)
    h = jnp.maximum(z @ w1 + b1 + temb_table[t][:, None, :], 0.0)
    recon = h @ w2 + b2
    x_flat = jnp.transpose(x_nchw, (0, 2, 3, 1)).reshape(B, HW, C)
    return jnp.mean((x_flat - recon) ** 2)


if __name__ == "__main__":
    key = jax.random.PRNGKey(0)
    k_x, k_n, k_t, k_w1, k_w2 = jax.random.split(key, 5)

    # inputs (forward(x) samples t and noise internally; done here deterministically)
    # TODO(synk): torch.randint/randn_like RNG done in the JAX wrapper, not in-kernel.
    x = jax.random.normal(k_x, (B, C, H, W), dtype=jnp.float32)
    noise = jax.random.normal(k_n, (B, C, H, W), dtype=jnp.float32)
    t = jax.random.randint(k_t, (B,), 0, TIMESTEPS)

    # deterministic synthetic denoise_fn parameters (pointwise MLP + time emb)
    w1 = jax.random.normal(k_w1, (C, HIDDEN), dtype=jnp.float32) / math.sqrt(C)
    w2 = jax.random.normal(k_w2, (HIDDEN, C), dtype=jnp.float32) / math.sqrt(HIDDEN)
    b1 = jnp.zeros((1, HIDDEN), jnp.float32)
    b2 = jnp.zeros((1, C), jnp.float32)

    # sinusoidal time-embedding table (TIMESTEPS, HIDDEN)
    pos = jnp.arange(TIMESTEPS, dtype=jnp.float32)[:, None]
    dim = jnp.arange(HIDDEN // 2, dtype=jnp.float32)[None, :]
    freqs = jnp.exp(-math.log(10000.0) * dim / (HIDDEN // 2))
    temb_table = jnp.concatenate([jnp.sin(pos * freqs), jnp.cos(pos * freqs)], axis=-1)

    sqrt_ac, sqrt_omac = make_schedule(TIMESTEPS)

    loss = cold_gaussian_diffuser_loss(x, noise, t, sqrt_ac, sqrt_omac,
                                       w1, b1, w2, b2, temb_table)
    loss = jax.block_until_ready(loss)

    ref = reference_loss(x, noise, t, sqrt_ac, sqrt_omac,
                         w1, b1, w2, b2, temb_table)
    np.testing.assert_allclose(np.asarray(loss), np.asarray(ref), rtol=1e-5, atol=1e-5)

    print("KERNEL_OK")
</pallas_src>

<mosaic_0001>
module attributes {stable_mosaic.version = 11 : i64} {
  func.func @diffuser_loss_kernel(%arg0: memref<8x256xf32, #tpu.memory_space<vmem>>, %arg1: memref<8x256xf32, #tpu.memory_space<vmem>>, %arg2: memref<8x3xf32, #tpu.memory_space<vmem>>, %arg3: memref<64x9xf32, #tpu.memory_space<vmem>>, %arg4: memref<8x64xf32, #tpu.memory_space<vmem>>, %arg5: memref<1xf32, #tpu.memory_space<smem>>) attributes {dimension_semantics = [], scalar_prefetch = 0 : i64, scratch_operands = 0 : i64, tpu.core_type = #tpu.core_type<tc>} {
    %c0 = arith.constant 0 : index
    %c0_0 = arith.constant 0 : index
    %0 = vector.load %arg0[%c0, %c0_0] : memref<8x256xf32, #tpu.memory_space<vmem>>, vector<8x256xf32>
    %c0_1 = arith.constant 0 : index
    %c0_2 = arith.constant 0 : index
    %1 = vector.load %arg1[%c0_1, %c0_2] : memref<8x256xf32, #tpu.memory_space<vmem>>, vector<8x256xf32>
    %c0_3 = arith.constant 0 : index
    %c0_4 = arith.constant 0 : index
    %2 = vector.load %arg2[%c0_3, %c0_4] : memref<8x3xf32, #tpu.memory_space<vmem>>, vector<8x3xf32>
    %3 = vector.extract_strided_slice %2 {offsets = [0, 0], sizes = [8, 1], strides = [1, 1]} : vector<8x3xf32> to vector<8x1xf32>
    %4 = vector.extract_strided_slice %2 {offsets = [0, 1], sizes = [8, 1], strides = [1, 1]} : vector<8x3xf32> to vector<8x1xf32>
    %5 = vector.extract_strided_slice %2 {offsets = [0, 2], sizes = [8, 1], strides = [1, 1]} : vector<8x3xf32> to vector<8x1xf32>
    %c0_5 = arith.constant 0 : index
    %c0_6 = arith.constant 0 : index
    %6 = vector.load %arg3[%c0_5, %c0_6] : memref<64x9xf32, #tpu.memory_space<vmem>>, vector<64x9xf32>
    %7 = vector.extract_strided_slice %6 {offsets = [0, 0], sizes = [64, 8], strides = [1, 1]} : vector<64x9xf32> to vector<64x8xf32>
    %8 = vector.extract_strided_slice %6 {offsets = [0, 8], sizes = [64, 1], strides = [1, 1]} : vector<64x9xf32> to vector<64x1xf32>
    %c0_7 = arith.constant 0 : index
    %c0_8 = arith.constant 0 : index
    %9 = vector.load %arg4[%c0_7, %c0_8] : memref<8x64xf32, #tpu.memory_space<vmem>>, vector<8x64xf32>
    %10 = vector.broadcast %3 : vector<8x1xf32> to vector<8x256xf32>
    %11 = arith.mulf %10, %0 : vector<8x256xf32>
    %12 = vector.broadcast %4 : vector<8x1xf32> to vector<8x256xf32>
    %13 = arith.mulf %12, %1 : vector<8x256xf32>
    %14 = arith.addf %11, %13 : vector<8x256xf32>
    %cst = arith.constant dense<0.000000e+00> : vector<64x256xf32>
    %15 = tpu.matmul %7, %14, %cst {dimension_numbers = #tpu.dot_dimension_numbers<[1], [0], [0], [1], [0, 0, 1, 1], [], []>} : vector<64x8xf32>, vector<8x256xf32>, vector<64x256xf32> -> vector<64x256xf32>
    %16 = vector.broadcast %8 : vector<64x1xf32> to vector<64x256xf32>
    %17 = arith.addf %15, %16 : vector<64x256xf32>
    %cst_9 = arith.constant 0.000000e+00 : f32
    %18 = vector.broadcast %cst_9 : f32 to vector<64x256xf32>
    %19 = arith.maximumf %17, %18 : vector<64x256xf32>
    %cst_10 = arith.constant dense<0.000000e+00> : vector<8x256xf32>
    %20 = tpu.matmul %9, %19, %cst_10 {dimension_numbers = #tpu.dot_dimension_numbers<[1], [0], [0], [1], [0, 0, 1, 1], [], []>} : vector<8x64xf32>, vector<64x256xf32>, vector<8x256xf32> -> vector<8x256xf32>
    %21 = vector.broadcast %5 : vector<8x1xf32> to vector<8x256xf32>
    %22 = arith.addf %20, %21 : vector<8x256xf32>
    %23 = arith.subf %0, %22 : vector<8x256xf32>
    %24 = arith.mulf %23, %23 : vector<8x256xf32>
    %25 = vector.shape_cast %24 : vector<8x256xf32> to vector<1x8x256xf32>
    %cst_11 = arith.constant dense<0.000000e+00> : vector<1xf32>
    %26 = vector.multi_reduction <add>, %25, %cst_11 [1, 2] : vector<1x8x256xf32> to vector<1xf32>
    %27 = vector.shape_cast %26 : vector<1xf32> to vector<1x1x1xf32>
    %28 = vector.extract %27[0, 0, 0] : f32 from vector<1x1x1xf32>
    %cst_12 = arith.constant 4.8828125E-4 : f32
    %29 = arith.mulf %28, %cst_12 : f32
    %c0_13 = arith.constant 0 : index
    %30 = memref.load %arg5[%c0_13] : memref<1xf32, #tpu.memory_space<smem>>
    memref.store %29, %arg5[%c0_13] : memref<1xf32, #tpu.memory_space<smem>>
    return
  }
}

</mosaic_0001>

<llo_original>
// kernel: tpu_custom_call.1
$region0: #{tpu_custom_call.1}
  #allocation0 [shape = 'u32[]', space=smem, size = 0x4, offset = 0x4, fixed_abs, tag = 'smem constant byte address 0x4 - core index']
  #allocation1 [shape = 'u32[144,128]{1,0:T(1,128)}', space=vmem, size = 0x12000, scoped, tag = 'internal scratch']
  %s0 = inlined_call_operand.vmem [shape: f32[8,256], index: 0, kind: input, shape index: {}]
  %s1 = inlined_call_operand.vmem [shape: f32[8,256], index: 1, kind: input, shape index: {}]
  %s2 = inlined_call_operand.vmem [shape: f32[8,3], index: 2, kind: input, shape index: {}]
  %s3 = inlined_call_operand.vmem [shape: f32[64,9], index: 3, kind: input, shape index: {}]
  %s4 = inlined_call_operand.vmem [shape: f32[8,64], index: 4, kind: input, shape index: {}]
  %s5 = inlined_call_operand.hbm [shape: f32[1], index: 5, kind: output, shape index: {}]
  %s6 = sld [smem:[#allocation0]]
  $region30: #{tpu_custom_call.1} parent=0
    _
  %s8 = ssub.s32 1, %s6
  %s9 = scalar_select 0, %s8, %s6
  $region1: #{tpu_custom_call.1} parent=0
    #allocation2 [shape = 'u8[512]{0}', space=smem, size = 0x200, scoped, tag = 'output window, operand 0, single buffered']
    #allocation3 [shape = 's32[1]{0}', space=sflag, size = 0x4, scoped, tag = 'scoped memory for tpu_custom_call.1']
    %10 = vsyncpa [#allocation3], 0
    // Predicated region
    $region2: #{tpu_custom_call.1} parent=1 // pred_check
      _
    $region3: #{tpu_custom_call.1} parent=1 // pred_check_branch
      %12 = sbr.rel (0) target = $region5
    $region4: #{tpu_custom_call.1} parent=1 // pred_region
      _
    $region5: #{tpu_custom_call.1} parent=1 // pred_fallthru
      _
    // Predicated region
    $region6: #{tpu_custom_call.1} parent=1 // pred_check
      _
    $region7: #{tpu_custom_call.1} parent=1 // pred_check_branch
      %14 = sbr.rel (0) target = $region9
    $region8: #{tpu_custom_call.1} parent=1 // pred_region
      _
    $region9: #{tpu_custom_call.1} parent=1 // pred_fallthru
      _
    // Predicated region
    $region10: #{tpu_custom_call.1} parent=1 // pred_check
      _
    $region11: #{tpu_custom_call.1} parent=1 // pred_check_branch
      %16 = sbr.rel (0) target = $region13
    $region12: #{tpu_custom_call.1} parent=1 // pred_region
      _
    $region13: #{tpu_custom_call.1} parent=1 // pred_fallthru
      _
    // Predicated region
    $region14: #{tpu_custom_call.1} parent=1 // pred_check
      _
    $region15: #{tpu_custom_call.1} parent=1 // pred_check_branch
      %18 = sbr.rel (0) target = $region17
    $region16: #{tpu_custom_call.1} parent=1 // pred_region
      _
    $region17: #{tpu_custom_call.1} parent=1 // pred_fallthru
      _
    // Predicated region
    $region18: #{tpu_custom_call.1} parent=1 // pred_check
      _
    $region19: #{tpu_custom_call.1} parent=1 // pred_check_branch
      %20 = sbr.rel (0) target = $region21
    $region20: #{tpu_custom_call.1} parent=1 // pred_region
      _
    $region21: #{tpu_custom_call.1} parent=1 // pred_fallthru
      _
    %v21 = vld [vmem:[%s0] sm:$0xff]
    %v22 = vld [vmem:[%s0 + $0x8] sm:$0xff]
    %v23 = vld [vmem:[%s1] sm:$0xff]
    %v24 = vld [vmem:[%s1 + $0x8] sm:$0xff]
    %v25 = vld [vmem:[%s2] sm:$0xff]
    %v26 = vld [vmem:[%s3] sm:$0xff]
    %v27 = vld [vmem:[%s3 + $0x8] sm:$0xff]
    %v28 = vld [vmem:[%s3 + $0x10] sm:$0xff]
    %v29 = vld [vmem:[%s3 + $0x18] sm:$0xff]
    %v30 = vld [vmem:[%s3 + $0x20] sm:$0xff]
    %v31 = vld [vmem:[%s3 + $0x28] sm:$0xff]
    %v32 = vld [vmem:[%s3 + $0x30] sm:$0xff]
    %v33 = vld [vmem:[%s3 + $0x38] sm:$0xff]
    %v34 = vld [vmem:[%s4] sm:$0xff]
    %36 = vset.pattern.permute.xlu0 0
    %37 = vperm.xlu0 %36, %v25
    %v38 = vpop.permute.xlu0 %37
    %v40 = vmul.f32 %v38, %v21
    %v41 = vmul.f32 %v38, %v22
    %42 = vset.pattern.permute.xlu0 1
    %43 = vperm.xlu0 %42, %v25
    %v44 = vpop.permute.xlu0 %43
    %v46 = vmul.f32 %v44, %v23
    %v47 = vmul.f32 %v44, %v24
    %v48 = vadd.f32 %v40, %v46
    %v49 = vadd.f32 %v41, %v47
    %51 = vset.pattern.permute.xlu0 8
    %52 = vperm.xlu0 %51, %v26
    %v53 = vpop.permute.xlu0 %52
    %56 = vset.pattern.permute.xlu0 8
    %57 = vperm.xlu0 %56, %v27
    %v58 = vpop.permute.xlu0 %57
    %61 = vset.pattern.permute.xlu0 8
    %62 = vperm.xlu0 %61, %v28
    %v63 = vpop.permute.xlu0 %62
    %66 = vset.pattern.permute.xlu0 8
    %67 = vperm.xlu0 %66, %v29
    %v68 = vpop.permute.xlu0 %67
    %71 = vset.pattern.permute.xlu0 8
    %72 = vperm.xlu0 %71, %v30
    %v73 = vpop.permute.xlu0 %72
    %76 = vset.pattern.permute.xlu0 8
    %77 = vperm.xlu0 %76, %v31
    %v78 = vpop.permute.xlu0 %77
    %81 = vset.pattern.permute.xlu0 8
    %82 = vperm.xlu0 %81, %v32
    %v83 = vpop.permute.xlu0 %82
    %86 = vset.pattern.permute.xlu0 8
    %87 = vperm.xlu0 %86, %v33
    %v88 = vpop.permute.xlu0 %87
    %vm90 = vcmask 64512
    %v91 = vsel %vm90, %v26, 0
    %v93 = vsel %vm90, %v27, 0
    %v95 = vsel %vm90, %v28, 0
    %v97 = vsel %vm90, %v29, 0
    %v99 = vsel %vm90, %v30, 0
    %v101 = vsel %vm90, %v31, 0
    %v103 = vsel %vm90, %v32, 0
    %v105 = vsel %vm90, %v33, 0
    %107 = vmatprep.subr.mxu0 %v49
    %108 = vmatpush1.msra.mxu0 %v48
    %109 = vmatprep.subr.mxu0 0.0
    %110 = vmatpush1.msra.mxu0 0.0
    %111 = vmatprep.subr.mxu0 0.0
    %112 = vmatpush1.msra.mxu0 0.0
    %113 = vmatprep.subr.mxu0 0.0
    %114 = vmatpush1.msra.mxu0 0.0
    %115 = vmatprep.subr.mxu0 0.0
    %116 = vmatpush1.msra.mxu0 0.0
    %117 = vmatprep.subr.mxu0 0.0
    %118 = vmatpush1.msra.mxu0 0.0
    %119 = vmatprep.subr.mxu0 0.0
    %120 = vmatpush1.msra.mxu0 0.0
    %121 = vmatprep.subr.mxu0 0.0
    %122 = vmatpush1.msra.mxu0 0.0
    %123 = vmatprep.subr.mxu0 0.0
    %124 = vmatpush1.msra.mxu0 0.0
    %125 = vmatprep.subr.mxu0 0.0
    %126 = vmatpush1.msra.mxu0 0.0
    %127 = vmatprep.subr.mxu0 0.0
    %128 = vmatpush1.msra.mxu0 0.0
    %129 = vmatprep.subr.mxu0 0.0
    %130 = vmatpush1.msra.mxu0 0.0
    %131 = vmatprep.subr.mxu0 0.0
    %132 = vmatpush1.msra.mxu0 0.0
    %133 = vmatprep.subr.mxu0 0.0
    %134 = vmatpush1.msra.mxu0 0.0
    %135 = vmatprep.subr.mxu0 0.0
    %136 = vmatpush1.msra.mxu0 0.0
    %137 = vmatprep.subr.mxu0 0.0
    %138 = vmatpush1.msra.mxu0 0.0
    %139 = vmatprep.subr.mxu0 0.0
    %140 = vmatpush1.msra.mxu0 0.0
    %141 = vmatprep.subr.mxu0 0.0
    %142 = vmatpush1.msra.mxu0 0.0
    %143 = vmatprep.subr.mxu0 0.0
    %144 = vmatpush1.msra.mxu0 0.0
    %145 = vmatprep.subr.mxu0 0.0
    %146 = vmatpush1.msra.mxu0 0.0
    %147 = vmatprep.subr.mxu0 0.0
    %148 = vmatpush1.msra.mxu0 0.0
    %149 = vmatprep.subr.mxu0 0.0
    %150 = vmatpush1.msra.mxu0 0.0
    %151 = vmatprep.subr.mxu0 0.0
    %152 = vmatpush1.msra.mxu0 0.0
    %153 = vmatprep.subr.mxu0 0.0
    %154 = vmatpush1.msra.mxu0 0.0
    %155 = vmatprep.subr.mxu0 0.0
    %156 = vmatpush1.msra.mxu0 0.0
    %157 = vmatprep.subr.mxu0 0.0
    %158 = vmatpush1.msra.mxu0 0.0
    %159 = vmatprep.subr.mxu0 0.0
    %160 = vmatpush1.msra.mxu0 0.0
    %161 = vmatprep.subr.mxu0 0.0
    %162 = vmatpush1.msra.mxu0 0.0
    %163 = vmatprep.subr.mxu0 0.0
    %164 = vmatpush1.msra.mxu0 0.0
    %165 = vmatprep.subr.mxu0 0.0
    %166 = vmatpush1.msra.mxu0 0.0
    %167 = vmatprep.subr.mxu0 0.0
    %168 = vmatpush1.msra.mxu0 0.0
    %169 = vmatprep.subr.mxu0 0.0
    %170 = vmatpush1.msra.mxu0 0.0
    %171 = vmatprep.mubr.f32.mxu0 0.0
    %172 = vmatmul.mubr.f32.gmra.mrb[0].mxu0 %v91
    %v173 = vpop.f32.mrb[0].mxu0
    %v174 = vadd.f32 %v53, %v173
    %v175 = vpop.f32.mrb[0].mxu0
    %v176 = vadd.f32 %v53, %v175
    %177 = vmatprep.mubr.f32.mxu0 0.0
    %178 = vmatmul.mubr.f32.gmra.mrb[0].mxu0 %v93
    %v179 = vpop.f32.mrb[0].mxu0
    %v180 = vadd.f32 %v58, %v179
    %v181 = vpop.f32.mrb[0].mxu0
    %v182 = vadd.f32 %v58, %v181
    %183 = vmatprep.mubr.f32.mxu0 0.0
    %184 = vmatmul.mubr.f32.gmra.mrb[0].mxu0 %v95
    %v185 = vpop.f32.mrb[0].mxu0
    %v186 = vadd.f32 %v63, %v185
    %v187 = vpop.f32.mrb[0].mxu0
    %v188 = vadd.f32 %v63, %v187
    %189 = vmatprep.mubr.f32.mxu0 0.0
    %190 = vmatmul.mubr.f32.gmra.mrb[0].mxu0 %v97
    %v191 = vpop.f32.mrb[0].mxu0
    %v192 = vadd.f32 %v68, %v191
    %v193 = vpop.f32.mrb[0].mxu0
    %v194 = vadd.f32 %v68, %v193
    %195 = vmatprep.mubr.f32.mxu0 0.0
    %196 = vmatmul.mubr.f32.gmra.mrb[0].mxu0 %v99
    %v197 = vpop.f32.mrb[0].mxu0
    %v198 = vadd.f32 %v73, %v197
    %v199 = vpop.f32.mrb[0].mxu0
    %v200 = vadd.f32 %v73, %v199
    %201 = vmatprep.mubr.f32.mxu0 0.0
    %202 = vmatmul.mubr.f32.gmra.mrb[0].mxu0 %v101
    %v203 = vpop.f32.mrb[0].mxu0
    %v204 = vadd.f32 %v78, %v203
    %v205 = vpop.f32.mrb[0].mxu0
    %v206 = vadd.f32 %v78, %v205
    %207 = vmatprep.mubr.f32.mxu0 0.0
    %208 = vmatmul.mubr.f32.gmra.mrb[0].mxu0 %v103
    %v209 = vpop.f32.mrb[0].mxu0
    %v210 = vadd.f32 %v83, %v209
    %v211 = vpop.f32.mrb[0].mxu0
    %v212 = vadd.f32 %v83, %v211
    %213 = vmatprep.mubr.f32.mxu0 0.0
    %214 = vmatmul.mubr.f32.gmra.mrb[0].mxu0 %v105
    %v215 = vpop.f32.mrb[0].mxu0
    %v216 = vadd.f32 %v88, %v215
    %v217 = vpop.f32.mrb[0].mxu0
    %v218 = vadd.f32 %v88, %v217
    %219 = vdwg.mxu0
    %v220 = vmax.f32 %v174, 0.0
    %v221 = vmax.f32 %v176, 0.0
    %v222 = vmax.f32 %v180, 0.0
    %v223 = vmax.f32 %v182, 0.0
    %v224 = vmax.f32 %v186, 0.0
    %v225 = vmax.f32 %v188, 0.0
    %v226 = vmax.f32 %v192, 0.0
    %v227 = vmax.f32 %v194, 0.0
    %v228 = vmax.f32 %v198, 0.0
    %v229 = vmax.f32 %v200, 0.0
    %v230 = vmax.f32 %v204, 0.0
    %v231 = vmax.f32 %v206, 0.0
    %v232 = vmax.f32 %v210, 0.0
    %v233 = vmax.f32 %v212, 0.0
    %v234 = vmax.f32 %v216, 0.0
    %v235 = vmax.f32 %v218, 0.0
    %236 = vset.pattern.permute.xlu0 2
    %237 = vperm.xlu0 %236, %v25
    %v238 = vpop.permute.xlu0 %237
    %vm240 = vcmask 523264
    %v242 = vsel %vm240, %v34, 0
    %244 = vmatprep.subr.mxu0 %v221
    %245 = vmatpush1.msra.mxu0 %v220
    %246 = vmatprep.subr.mxu0 %v223
    %247 = vmatpush1.msra.mxu0 %v222
    %248 = vmatprep.subr.mxu0 %v225
    %249 = vmatpush1.msra.mxu0 %v224
    %250 = vmatprep.subr.mxu0 %v227
    %251 = vmatpush1.msra.mxu0 %v226
    %252 = vmatprep.subr.mxu0 %v229
    %253 = vmatpush1.msra.mxu0 %v228
    %254 = vmatprep.subr.mxu0 %v231
    %255 = vmatpush1.msra.mxu0 %v230
    %256 = vmatprep.subr.mxu0 %v233
    %257 = vmatpush1.msra.mxu0 %v232
    %258 = vmatprep.subr.mxu0 %v235
    %259 = vmatpush1.msra.mxu0 %v234
    %260 = vmatprep.subr.mxu0 0.0
    %261 = vmatpush1.msra.mxu0 0.0
    %262 = vmatprep.subr.mxu0 0.0
    %263 = vmatpush1.msra.mxu0 0.0
    %264 = vmatprep.subr.mxu0 0.0
    %265 = vmatpush1.msra.mxu0 0.0
    %266 = vmatprep.subr.mxu0 0.0
    %267 = vmatpush1.msra.mxu0 0.0
    %268 = vmatprep.subr.mxu0 0.0
    %269 = vmatpush1.msra.mxu0 0.0
    %270 = vmatprep.subr.mxu0 0.0
    %271 = vmatpush1.msra.mxu0 0.0
    %272 = vmatprep.subr.mxu0 0.0
    %273 = vmatpush1.msra.mxu0 0.0
    %274 = vmatprep.subr.mxu0 0.0
    %275 = vmatpush1.msra.mxu0 0.0
    %276 = vmatprep.subr.mxu0 0.0
    %277 = vmatpush1.msra.mxu0 0.0
    %278 = vmatprep.subr.mxu0 0.0
    %279 = vmatpush1.msra.mxu0 0.0
    %280 = vmatprep.subr.mxu0 0.0
    %281 = vmatpush1.msra.mxu0 0.0
    %282 = vmatprep.subr.mxu0 0.0
    %283 = vmatpush1.msra.mxu0 0.0
    %284 = vmatprep.subr.mxu0 0.0
    %285 = vmatpush1.msra.mxu0 0.0
    %286 = vmatprep.subr.mxu0 0.0
    %287 = vmatpush1.msra.mxu0 0.0
    %288 = vmatprep.subr.mxu0 0.0
    %289 = vmatpush1.msra.mxu0 0.0
    %290 = vmatprep.subr.mxu0 0.0
    %291 = vmatpush1.msra.mxu0 0.0
    %292 = vmatprep.subr.mxu0 0.0
    %293 = vmatpush1.msra.mxu0 0.0
    %294 = vmatprep.subr.mxu0 0.0
    %295 = vmatpush1.msra.mxu0 0.0
    %296 = vmatprep.subr.mxu0 0.0
    %297 = vmatpush1.msra.mxu0 0.0
    %298 = vmatprep.subr.mxu0 0.0
    %299 = vmatpush1.msra.mxu0 0.0
    %300 = vmatprep.subr.mxu0 0.0
    %301 = vmatpush1.msra.mxu0 0.0
    %302 = vmatprep.subr.mxu0 0.0
    %303 = vmatpush1.msra.mxu0 0.0
    %304 = vmatprep.subr.mxu0 0.0
    %305 = vmatpush1.msra.mxu0 0.0
    %306 = vmatprep.subr.mxu0 0.0
    %307 = vmatpush1.msra.mxu0 0.0
    %308 = vmatprep.mubr.f32.mxu0 0.0
    %309 = vmatmul.mubr.f32.gmra.mrb[0].mxu0 %v242
    %v310 = vpop.f32.mrb[0].mxu0
    %v311 = vadd.f32 %v238, %v310
    %v312 = vpop.f32.mrb[0].mxu0
    %v313 = vadd.f32 %v238, %v312
    %314 = vdwg.mxu0
    %v315 = vsub.f32 %v21, %v311
    %v316 = vsub.f32 %v22, %v313
    %v317 = vmul.f32 %v315, %v315
    %v318 = vmul.f32 %v316, %v316
    %v319 = vadd.f32 %v317, %v318
    %320 = vadd.xlane.f32.xlu0 %v319
    %v321 = vpop.xlane.xlu0 %320
    %v322 = vrot.slane %v321, 4
    %v323 = vadd.f32 %v321, %v322
    %v324 = vrot.slane %v323, 2
    %v325 = vadd.f32 %v323, %v324
    %v326 = vrot.slane %v325, 1
    %v327 = vadd.f32 %v325, %v326
    %s328 = vtos %v327
    %s329 = smul.f32 %s328, 0.00048828125
    %s330 = scalar_lea.smem [#allocation2], 0
    %331 = sst [smem:[%s330]] %s329
    // Predicated region
    $region22: #{tpu_custom_call.1} parent=1 // pred_check
      _
    $region23: #{tpu_custom_call.1} parent=1 // pred_check_branch
      %333 = sbr.rel (0) target = $region25
    $region24: #{tpu_custom_call.1} parent=1 // pred_region
      %s335 = ssub.s32 16, 16
      %336 = vsyncadd [#allocation3], %s335
      %339 = dma.smem_to_hbm [#allocation2], 16, %s5, [#allocation3]
    $region25: #{tpu_custom_call.1} parent=1 // pred_fallthru
      _
    // Predicated region
    $region26: #{tpu_custom_call.1} parent=1 // pred_check
      _
    $region27: #{tpu_custom_call.1} parent=1 // pred_check_branch
      %341 = sbr.rel (0) target = $region29
    $region28: #{tpu_custom_call.1} parent=1 // pred_region
      %342 = dma.done [#allocation3], 16
    $region29: #{tpu_custom_call.1} parent=1 // pred_fallthru
      _
    %343 = sfence
    %344 = vsyncpa [#allocation3], 1

</llo_original>
